<compile_context>
chip_gen: v6e
topology: v6e:2x2x1
jax: 0.10.0
libtpu: 0.0.40
codegen_flags: <defaults>
</compile_context>

<pallas_src>
import functools

import jax
import jax.numpy as jnp
from jax import lax
from jax.experimental import pallas as pl
from jax.experimental.pallas import tpu as pltpu

_MIB = 1024 * 1024


def _round_up(x, m):
    return ((x + m - 1) // m) * m


def _cdiv(a, b):
    return (a + b - 1) // b


def _vmem_plan():
    """Generation-aware VMEM planning.

    Returns (vmem_limit_bytes for CompilerParams, tile-picking budget).
      v5e/v6e: 128 MiB physical -> 96 MiB scoped limit, 64 MiB tile budget.
      v7x:      64 MiB physical -> 48 MiB scoped limit, 32 MiB tile budget.
    """
    cap = 0
    try:
        cap = int(getattr(pltpu.get_tpu_info(), "vmem_capacity_bytes", 0) or 0)
    except Exception:
        cap = 0
    if cap <= 0:
        cap = 64 * _MIB  # conservative fallback (v7x per-core size)
    limit = min((cap * 3) // 4, 96 * _MIB)
    budget = (limit * 2) // 3
    return limit, budget


# ----------------------------- LayerNorm kernel ------------------------------

def _layernorm_kernel(x_ref, g_ref, b_ref, o_ref, *, eps):
    # x_ref: (TR, D) row tile; g_ref/b_ref: (1, D) resident affine params.
    x = x_ref[...].astype(jnp.float32)
    # Two-pass variance: numerically safer than E[x^2] - mean^2.
    mean = jnp.mean(x, axis=-1, keepdims=True)
    cent = x - mean
    var = jnp.mean(cent * cent, axis=-1, keepdims=True)
    inv = lax.rsqrt(var + eps)
    o_ref[...] = (cent * inv * g_ref[...] + b_ref[...]).astype(o_ref.dtype)


def _pick_row_tile(R, D, itemsize, budget, target=512):
    tr = min(target, _round_up(R, 8))
    # Double-buffered input + output tiles.
    while tr > 8 and 4 * tr * D * itemsize > budget:
        tr = _round_up(max(tr // 2, 8), 8)
    # Megacore: prefer >= 2 blocks on the parallel row axis.
    if _cdiv(R, tr) < 2 and R > 8:
        tr = _round_up(max(_cdiv(R, 2), 8), 8)
    return tr


def layernorm_pallas(x, gamma, beta, *, eps=1e-5):
    """LayerNorm over the last dim of x (any leading dims)."""
    orig_shape = x.shape
    D = orig_shape[-1]
    x2 = x.reshape(-1, D)
    R = x2.shape[0]

    limit, budget = _vmem_plan()
    tr = _pick_row_tile(R, D, x2.dtype.itemsize, budget)

    g2 = gamma.reshape(1, D).astype(jnp.float32)
    b2 = beta.reshape(1, D).astype(jnp.float32)

    out = pl.pallas_call(
        functools.partial(_layernorm_kernel, eps=eps),
        out_shape=jax.ShapeDtypeStruct((R, D), x.dtype),
        grid_spec=pltpu.PrefetchScalarGridSpec(
            num_scalar_prefetch=0,
            grid=(_cdiv(R, tr),),
            in_specs=[
                pl.BlockSpec((tr, D), lambda i: (i, 0)),
                pl.BlockSpec((1, D), lambda i: (0, 0)),
                pl.BlockSpec((1, D), lambda i: (0, 0)),
            ],
            out_specs=pl.BlockSpec((tr, D), lambda i: (i, 0)),
        ),
        compiler_params=pltpu.CompilerParams(
            dimension_semantics=("parallel",),
            vmem_limit_bytes=limit),
    )(x2, g2, b2)
    return out.reshape(orig_shape)


# ----------------------- Fused LayerNorm + Linear kernel ----------------------

def _prenorm_linear_kernel(x_ref, g_ref, b_ref, w_ref, bias_ref, o_ref,
                           normed_ref, *, eps):
    # Grid = (rows i [parallel], out-cols j [arbitrary, innermost]).
    # LayerNorm (full D == matmul K) is computed once per row tile, cached in
    # the VMEM scratch in the weight dtype, and reused for every j.
    j = pl.program_id(1)

    @pl.when(j == 0)
    def _():
        x = x_ref[...].astype(jnp.float32)
        mean = jnp.mean(x, axis=-1, keepdims=True)
        cent = x - mean
        var = jnp.mean(cent * cent, axis=-1, keepdims=True)
        inv = lax.rsqrt(var + eps)
        normed = cent * inv * g_ref[...] + b_ref[...]
        normed_ref[...] = normed.astype(normed_ref.dtype)

    acc = jnp.dot(normed_ref[...], w_ref[...],
                  preferred_element_type=jnp.float32)
    o_ref[...] = (acc + bias_ref[...]).astype(o_ref.dtype)


def _pick_fused_tiles(R, D, Dout, x_item, w_item, out_item, budget):
    def fits(tm, tn):
        b = 2 * tm * D * x_item          # x tile (double-buffered)
        b += 2 * D * tn * w_item         # weight tile
        b += 2 * tm * tn * out_item      # output tile
        b += 2 * (2 * D + tn) * 4        # gamma / beta / bias
        b += tm * D * w_item             # normed scratch (single buffer)
        return b <= budget

    tm = min(512, _round_up(R, 8))
    # Prefer the weight fully resident (tn == Dout): it is DMA'd once and the
    # LayerNorm runs exactly once per row tile. Shrink tn (multiples of 128)
    # only when the weight tile itself cannot fit.
    tn = Dout
    if Dout > 128:
        while tn > 128 and not fits(min(tm, 128), tn):
            tn = max(128, ((tn // 2) // 128) * 128)
    while tm > 8 and not fits(tm, tn):
        tm = _round_up(max(tm // 2, 8), 8)
    # Megacore: prefer >= 2 blocks on the parallel row axis.
    if _cdiv(R, tm) < 2 and R > 8:
        tm = _round_up(max(_cdiv(R, 2), 8), 8)
    return tm, tn


def prenorm_linear_pallas(x, gamma, beta, w, bias, *, eps=1e-5):
    """Fused: LayerNorm(x) @ w + bias, one pallas_call, no HBM round trip."""
    orig_shape = x.shape
    D = orig_shape[-1]
    Dout = w.shape[1]
    x2 = x.reshape(-1, D)
    R = x2.shape[0]

    limit, budget = _vmem_plan()
    tm, tn = _pick_fused_tiles(R, D, Dout, x2.dtype.itemsize,
                               w.dtype.itemsize, x2.dtype.itemsize, budget)

    g2 = gamma.reshape(1, D).astype(jnp.float32)
    b2 = beta.reshape(1, D).astype(jnp.float32)
    bias2 = bias.reshape(1, Dout).astype(jnp.float32)

    out = pl.pallas_call(
        functools.partial(_prenorm_linear_kernel, eps=eps),
        out_shape=jax.ShapeDtypeStruct((R, Dout), x.dtype),
        grid_spec=pltpu.PrefetchScalarGridSpec(
            num_scalar_prefetch=0,
            grid=(_cdiv(R, tm), _cdiv(Dout, tn)),
            in_specs=[
                pl.BlockSpec((tm, D), lambda i, j: (i, 0)),
                pl.BlockSpec((1, D), lambda i, j: (0, 0)),
                pl.BlockSpec((1, D), lambda i, j: (0, 0)),
                pl.BlockSpec((D, tn), lambda i, j: (0, j)),
                pl.BlockSpec((1, tn), lambda i, j: (0, j)),
            ],
            out_specs=pl.BlockSpec((tm, tn), lambda i, j: (i, j)),
            # Normalized row tile cached across the j sweep (in weight dtype).
            scratch_shapes=[pltpu.VMEM((tm, D), w.dtype)],
        ),
        compiler_params=pltpu.CompilerParams(
            dimension_semantics=("parallel", "arbitrary"),
            vmem_limit_bytes=limit),
    )(x2, g2, b2, w, bias2)
    return out.reshape(orig_shape[:-1] + (Dout,))


# --------------------------- Tiled Linear (standalone) ------------------------

def _linear_kernel(x_ref, w_ref, b_ref, o_ref, acc_ref):
    k = pl.program_id(2)

    @pl.when(k == 0)
    def _():
        acc_ref[...] = jnp.zeros_like(acc_ref)

    acc_ref[...] += jnp.dot(x_ref[...].astype(w_ref.dtype), w_ref[...],
                            preferred_element_type=jnp.float32)

    @pl.when(k == pl.num_programs(2) - 1)
    def _():
        o_ref[...] = (acc_ref[...] + b_ref[...]).astype(o_ref.dtype)


def _pick_matmul_tiles(R, Din, Dout, x_item, w_item, out_item, budget):
    # The reduction (K) tile must divide Din exactly — a ragged K edge block
    # would feed stale VMEM data into the accumulator.
    tk = Din
    for cand in (1024, 512, 256, 128):
        if Din % cand == 0:
            tk = cand
            break
    tn = Dout if Dout <= 512 else 512

    def vmem_bytes(tm_, tn_, tk_):
        return (2 * (tm_ * tk_ * x_item + tk_ * tn_ * w_item
                     + tm_ * tn_ * out_item + tn_ * 4)
                + tm_ * tn_ * 4)  # f32 acc scratch, single buffer

    tm = min(512, _round_up(R, 8))
    while tm > 8 and vmem_bytes(tm, tn, tk) > budget:
        tm = _round_up(max(tm // 2, 8), 8)
    while tn > 128 and vmem_bytes(tm, tn, tk) > budget:
        tn = max(128, ((tn // 2) // 128) * 128)
    if _cdiv(R, tm) < 2 and R > 8:
        tm = _round_up(max(_cdiv(R, 2), 8), 8)
    return tm, tn, tk


def linear_pallas(x, w, b):
    """y = x @ w + b with (M, N, K) tiling and an f32 VMEM accumulator."""
    orig_shape = x.shape
    Din = orig_shape[-1]
    Dout = w.shape[1]
    x2 = x.reshape(-1, Din)
    R = x2.shape[0]

    limit, budget = _vmem_plan()
    tm, tn, tk = _pick_matmul_tiles(R, Din, Dout, x2.dtype.itemsize,
                                    w.dtype.itemsize, x2.dtype.itemsize, budget)
    b2 = b.reshape(1, Dout).astype(jnp.float32)

    out = pl.pallas_call(
        _linear_kernel,
        out_shape=jax.ShapeDtypeStruct((R, Dout), x.dtype),
        grid_spec=pltpu.PrefetchScalarGridSpec(
            num_scalar_prefetch=0,
            grid=(_cdiv(R, tm), _cdiv(Dout, tn), Din // tk),
            in_specs=[
                pl.BlockSpec((tm, tk), lambda i, j, k: (i, k)),
                pl.BlockSpec((tk, tn), lambda i, j, k: (k, j)),
                pl.BlockSpec((1, tn), lambda i, j, k: (0, j)),
            ],
            out_specs=pl.BlockSpec((tm, tn), lambda i, j, k: (i, j)),
            scratch_shapes=[pltpu.VMEM((tm, tn), jnp.float32)],
        ),
        compiler_params=pltpu.CompilerParams(
            dimension_semantics=("parallel", "parallel", "arbitrary"),
            vmem_limit_bytes=limit),
    )(x2, w, b2)
    return out.reshape(orig_shape[:-1] + (Dout,))


# ---------------------------------- Modules ------------------------------------

class PallasLinear:
    """Linear layer (y = x @ w + b) backed by the tiled Pallas matmul.

    Weights are stored in bf16 (native MXU rate on v5e/v6e/v7x, half the DMA
    bytes); accumulation is f32, bias is f32.
    """

    def __init__(self, din, dout, key, dtype=jnp.bfloat16):
        kw, kb = jax.random.split(key)
        self.w = (jax.random.normal(kw, (din, dout), dtype=jnp.float32)
                  * 0.02).astype(dtype)
        self.b = jax.random.normal(kb, (dout,), dtype=jnp.float32) * 0.01

    def __call__(self, x):
        return linear_pallas(x, self.w, self.b)


class PreNorm:
    """JAX/Pallas equivalent of:
        self.norm = nn.LayerNorm(dim); forward(x) = fn(norm(x), **kwargs)
    When `fn` is a PallasLinear, the LayerNorm is fused into its matmul kernel
    (single pallas_call, no HBM round trip of the normalized activation).
    """

    def __init__(self, dim, fn, eps=1e-5):
        self.dim = dim
        self.fn = fn
        self.eps = eps
        # nn.LayerNorm default init: weight = 1, bias = 0
        self.gamma = jnp.ones((dim,), dtype=jnp.float32)
        self.beta = jnp.zeros((dim,), dtype=jnp.float32)

    def __call__(self, x, **kwargs):
        if isinstance(self.fn, PallasLinear) and not kwargs:
            return prenorm_linear_pallas(x, self.gamma, self.beta,
                                         self.fn.w, self.fn.b, eps=self.eps)
        # Generic fallback: standalone LayerNorm kernel, then fn.
        normed = layernorm_pallas(x, self.gamma, self.beta, eps=self.eps)
        return self.fn(normed, **kwargs)


# ---------------------------------- Main ---------------------------------------

if __name__ == "__main__":
    # Lane-dense feature dims (multiples of 128) so vregs/MXU are fully used.
    B, N, D, Dout = 2, 8, 128, 128

    key = jax.random.PRNGKey(0)
    kx, kfn, kg, kb = jax.random.split(key, 4)
    x = jax.random.normal(kx, (B, N, D), dtype=jnp.float32)

    fn = PallasLinear(D, Dout, kfn)                 # bf16 weights
    model = PreNorm(D, fn)
    # Non-default affine params so the reference check exercises gamma/beta.
    model.gamma = 1.0 + 0.1 * jax.random.normal(kg, (D,), dtype=jnp.float32)
    model.beta = 0.1 * jax.random.normal(kb, (D,), dtype=jnp.float32)

    out = jax.block_until_ready(model(x))            # fused LN + Linear path

    # Reference in plain JAX (LayerNorm with gamma/beta, then Linear).
    eps = 1e-5
    mean = jnp.mean(x, axis=-1, keepdims=True)
    var = jnp.mean((x - mean) ** 2, axis=-1, keepdims=True)
    normed_ref = (x - mean) / jnp.sqrt(var + eps) * model.gamma + model.beta
    ref = normed_ref @ fn.w.astype(jnp.float32) + fn.b

    assert out.shape == (B, N, Dout)
    # Tolerance sized for the bf16-MXU activation cast (f32 accumulation).
    assert jnp.allclose(out, ref, atol=5e-3, rtol=5e-3), (
        "fused mismatch, max abs err "
        f"{float(jnp.max(jnp.abs(out - ref)))}")

    # Also exercise the generic (unfused) path: standalone LN kernel ...
    normed = jax.block_until_ready(
        layernorm_pallas(x, model.gamma, model.beta, eps=eps))
    assert jnp.allclose(normed, normed_ref, atol=1e-4, rtol=1e-4), (
        "layernorm mismatch, max abs err "
        f"{float(jnp.max(jnp.abs(normed - normed_ref)))}")

    # ... and the tiled linear kernel on its own.
    lin = jax.block_until_ready(linear_pallas(normed_ref, fn.w, fn.b))
    assert jnp.allclose(lin, ref, atol=5e-3, rtol=5e-3), (
        "linear mismatch, max abs err "
        f"{float(jnp.max(jnp.abs(lin - ref)))}")

    print("KERNEL_OK")
</pallas_src>

<mosaic_0001>
module attributes {stable_mosaic.version = 11 : i64} {
  func.func @_prenorm_linear_kernel(%arg0: i32, %arg1: i32, %arg2: memref<8x128xf32, #tpu.memory_space<vmem>>, %arg3: memref<1x128xf32, #tpu.memory_space<vmem>>, %arg4: memref<1x128xf32, #tpu.memory_space<vmem>>, %arg5: memref<128x128xbf16, #tpu.memory_space<vmem>>, %arg6: memref<1x128xf32, #tpu.memory_space<vmem>>, %arg7: memref<8x128xf32, #tpu.memory_space<vmem>>, %arg8: memref<8x128xbf16, #tpu.memory_space<vmem>>) attributes {dimension_semantics = [#tpu.dimension_semantics<parallel>, #tpu.dimension_semantics<arbitrary>], iteration_bounds = array<i64: 2, 1>, scalar_prefetch = 0 : i64, scratch_operands = 1 : i64, tpu.core_type = #tpu.core_type<tc>, window_params = [{transform_indices = @transform_0, window_bounds = array<i64: 8, 128>}, {pipeline_mode = #tpu.pipeline_mode<synchronous>, transform_indices = @transform_1, window_bounds = array<i64: 1, 128>}, {pipeline_mode = #tpu.pipeline_mode<synchronous>, transform_indices = @transform_2, window_bounds = array<i64: 1, 128>}, {transform_indices = @transform_3, window_bounds = array<i64: 128, 128>}, {transform_indices = @transform_4, window_bounds = array<i64: 1, 128>}, {transform_indices = @transform_5, window_bounds = array<i64: 8, 128>}]} {
    %c0_i32 = arith.constant 0 : i32
    %0 = arith.cmpi eq, %arg1, %c0_i32 : i32
    %1 = arith.extui %0 : i1 to i32
    %c0_i32_0 = arith.constant 0 : i32
    %2 = arith.cmpi ne, %1, %c0_i32_0 : i32
    scf.if %2 {
      %c0_8 = arith.constant 0 : index
      %c0_9 = arith.constant 0 : index
      %10 = vector.load %arg2[%c0_8, %c0_9] : memref<8x128xf32, #tpu.memory_space<vmem>>, vector<8x128xf32>
      %cst_10 = arith.constant dense<0.000000e+00> : vector<8xf32>
      %11 = vector.multi_reduction <add>, %10, %cst_10 [1] : vector<8x128xf32> to vector<8xf32>
      %12 = vector.shape_cast %11 : vector<8xf32> to vector<8x1xf32>
      %cst_11 = arith.constant 1.280000e+02 : f32
      %13 = vector.broadcast %cst_11 : f32 to vector<8x1xf32>
      %14 = arith.divf %12, %13 : vector<8x1xf32>
      %15 = vector.broadcast %14 : vector<8x1xf32> to vector<8x128xf32>
      %16 = arith.subf %10, %15 : vector<8x128xf32>
      %17 = arith.mulf %16, %16 : vector<8x128xf32>
      %cst_12 = arith.constant dense<0.000000e+00> : vector<8xf32>
      %18 = vector.multi_reduction <add>, %17, %cst_12 [1] : vector<8x128xf32> to vector<8xf32>
      %19 = vector.shape_cast %18 : vector<8xf32> to vector<8x1xf32>
      %cst_13 = arith.constant 1.280000e+02 : f32
      %20 = vector.broadcast %cst_13 : f32 to vector<8x1xf32>
      %21 = arith.divf %19, %20 : vector<8x1xf32>
      %cst_14 = arith.constant 9.99999974E-6 : f32
      %22 = vector.broadcast %cst_14 : f32 to vector<8x1xf32>
      %23 = arith.addf %21, %22 : vector<8x1xf32>
      %24 = math.rsqrt %23 : vector<8x1xf32>
      %25 = vector.broadcast %24 : vector<8x1xf32> to vector<8x128xf32>
      %26 = arith.mulf %16, %25 : vector<8x128xf32>
      %c0_15 = arith.constant 0 : index
      %c0_16 = arith.constant 0 : index
      %27 = vector.load %arg3[%c0_15, %c0_16] : memref<1x128xf32, #tpu.memory_space<vmem>>, vector<1x128xf32>
      %28 = vector.broadcast %27 : vector<1x128xf32> to vector<8x128xf32>
      %29 = arith.mulf %26, %28 : vector<8x128xf32>
      %c0_17 = arith.constant 0 : index
      %c0_18 = arith.constant 0 : index
      %30 = vector.load %arg4[%c0_17, %c0_18] : memref<1x128xf32, #tpu.memory_space<vmem>>, vector<1x128xf32>
      %31 = vector.broadcast %30 : vector<1x128xf32> to vector<8x128xf32>
      %32 = arith.addf %29, %31 : vector<8x128xf32>
      %33 = arith.truncf %32 : vector<8x128xf32> to vector<8x128xbf16>
      %c0_19 = arith.constant 0 : index
      %c0_20 = arith.constant 0 : index
      %34 = vector.load %arg8[%c0_19, %c0_20] : memref<8x128xbf16, #tpu.memory_space<vmem>>, vector<8x128xbf16>
      tpu.vector_store %arg8[%c0_19, %c0_20], %33 {strides = array<i32>} : memref<8x128xbf16, #tpu.memory_space<vmem>>, vector<8x128xbf16>,
    } else {
    }
    %c0 = arith.constant 0 : index
    %c0_1 = arith.constant 0 : index
    %3 = vector.load %arg8[%c0, %c0_1] : memref<8x128xbf16, #tpu.memory_space<vmem>>, vector<8x128xbf16>
    %c0_2 = arith.constant 0 : index
    %c0_3 = arith.constant 0 : index
    %4 = vector.load %arg5[%c0_2, %c0_3] : memref<128x128xbf16, #tpu.memory_space<vmem>>, vector<128x128xbf16>
    %cst = arith.constant dense<0.000000e+00> : vector<8x128xf32>
    %5 = tpu.matmul %3, %4, %cst {dimension_numbers = #tpu.dot_dimension_numbers<[1], [0], [0], [1], [0, 0, 1, 1], [], []>} : vector<8x128xbf16>, vector<128x128xbf16>, vector<8x128xf32> -> vector<8x128xf32>
    %c0_4 = arith.constant 0 : index
    %c0_5 = arith.constant 0 : index
    %6 = vector.load %arg6[%c0_4, %c0_5] : memref<1x128xf32, #tpu.memory_space<vmem>>, vector<1x128xf32>
    %7 = vector.broadcast %6 : vector<1x128xf32> to vector<8x128xf32>
    %8 = arith.addf %5, %7 : vector<8x128xf32>
    %c0_6 = arith.constant 0 : index
    %c0_7 = arith.constant 0 : index
    %9 = vector.load %arg7[%c0_6, %c0_7] : memref<8x128xf32, #tpu.memory_space<vmem>>, vector<8x128xf32>
    tpu.vector_store %arg7[%c0_6, %c0_7], %8 {strides = array<i32>} : memref<8x128xf32, #tpu.memory_space<vmem>>, vector<8x128xf32>,
    return
  }
  func.func @transform_0(%arg0: i32, %arg1: i32) -> (i32, i32) {
    %c0_i32 = arith.constant 0 : i32
    %c0_i32_0 = arith.constant 0 : i32
    return %arg0, %c0_i32 : i32, i32
  }
  func.func @transform_1(%arg0: i32, %arg1: i32) -> (i32, i32) {
    %c0_i32 = arith.constant 0 : i32
    %c0_i32_0 = arith.constant 0 : i32
    %c0_i32_1 = arith.constant 0 : i32
    return %c0_i32, %c0_i32_0 : i32, i32
  }
  func.func @transform_2(%arg0: i32, %arg1: i32) -> (i32, i32) {
    %c0_i32 = arith.constant 0 : i32
    %c0_i32_0 = arith.constant 0 : i32
    %c0_i32_1 = arith.constant 0 : i32
    return %c0_i32, %c0_i32_0 : i32, i32
  }
  func.func @transform_3(%arg0: i32, %arg1: i32) -> (i32, i32) {
    %c0_i32 = arith.constant 0 : i32
    %c0_i32_0 = arith.constant 0 : i32
    return %c0_i32, %arg1 : i32, i32
  }
  func.func @transform_4(%arg0: i32, %arg1: i32) -> (i32, i32) {
    %c0_i32 = arith.constant 0 : i32
    %c0_i32_0 = arith.constant 0 : i32
    return %c0_i32, %arg1 : i32, i32
  }
  func.func @transform_5(%arg0: i32, %arg1: i32) -> (i32, i32) {
    %c0_i32 = arith.constant 0 : i32
    return %arg0, %arg1 : i32, i32
  }
}

</mosaic_0001>

<llo_original>
// kernel: tpu_custom_call.1
$region0: #{tpu_custom_call.1}
  #allocation0 [shape = 'u32[]', space=smem, size = 0x4, offset = 0x4, fixed_abs, tag = 'smem constant byte address 0x4 - core index']
  #allocation1 [shape = 'u32[144,128]{1,0:T(1,128)}', space=vmem, size = 0x12000, scoped, tag = 'internal scratch']
  #allocation2 [shape = 'bf16[8,128]{1,0:T(8,128)(2,1)}', space=vmem, size = 0x800, scoped, tag = 'scratch operand']
  %s0 = inlined_call_operand.hbm [shape: f32[16,128], index: 0, kind: input, shape index: {}]
  %s1 = inlined_call_operand.vmem [shape: f32[1,128], index: 1, kind: input, shape index: {}]
  %s2 = inlined_call_operand.vmem [shape: f32[1,128], index: 2, kind: input, shape index: {}]
  %s3 = inlined_call_operand.hbm [shape: bf16[128,128], index: 3, kind: input, shape index: {}]
  %s4 = inlined_call_operand.vmem [shape: f32[1,128], index: 4, kind: input, shape index: {}]
  %s5 = inlined_call_operand.hbm [shape: f32[16,128], index: 5, kind: output, shape index: {}]
  %s6 = sld [smem:[#allocation0]]
  $region65: #{tpu_custom_call.1} parent=0
    _
  %s8 = ssub.s32 1, %s6
  %s9 = scalar_select 0, %s8, %s6
  $region1: #{tpu_custom_call.1} parent=0
    #allocation3 [shape = 'u8[8192]{0}', space=vmem, size = 0x2000, scoped, tag = 'input window, operand 0']
    #allocation4 [shape = 's32[2]{0}', space=sflag, size = 0x8, scoped, tag = 'scoped memory for tpu_custom_call.1']
    #allocation5 [shape = 's32[2]{0}', space=sflag, size = 0x8, scoped, tag = 'scoped memory for tpu_custom_call.1']
    #allocation6 [shape = 'u8[32768]{0}', space=vmem, size = 0x8000, scoped, tag = 'input window, operand 3, single buffered']
    #allocation7 [shape = 's32[1]{0}', space=sflag, size = 0x4, scoped, tag = 'scoped memory for tpu_custom_call.1']
    #allocation8 [shape = 'u8[8192]{0}', space=vmem, size = 0x2000, scoped, tag = 'output window, operand 0']
    %10 = vsyncpa [#allocation4], 0
    %s11 = scalar_lea.sflag [#allocation4], 1
    %12 = vsyncpa %s11, 0
    %13 = vsyncpa [#allocation7], 0
    %14 = vsyncpa [#allocation5], 0
    %s15 = scalar_lea.sflag [#allocation5], 1
    %16 = vsyncpa %s15, 0
    loop: start=0, step=1, limit=4
    $region2: #{tpu_custom_call.1} parent=1 // loop_pre_header
      _
    $region3: #{tpu_custom_call.1} parent=1 // loop_header
      %s18 = sphi 0, %s22
      %p19 = scmp.ge.s32.totalorder %s18, 4
      %s25 = sphi 0, %s37
      %s26 = sphi 0, %s33
      %s27 = sphi 0, %s25
      %s28 = sphi 0, %s26
      %s29 = sphi 0, %s27
      %s30 = sphi 0, %s28
      %s40 = sphi 0, %s42
      %s43 = sphi 0, %s40
      %s44 = sphi 0, %s43
      %s60 = sphi 0, %s44
      %s64 = sphi 0, %s64
      %s66 = sphi 0, %s64
      %s67 = sphi 0, %s66
      %s81 = sphi 0, %s67
      %s85 = sphi 0, %s85
      %s87 = sphi 0, %s85
      %s88 = sphi 0, %s87
      %s102 = sphi 0, %s88
      %s108 = sphi 0, %s110
      %s111 = sphi 0, %s108
      %s112 = sphi 0, %s111
      %s128 = sphi 0, %s112
      %s134 = sphi 0, %s136
      %s137 = sphi 0, %s134
      %s138 = sphi 0, %s137
      %s154 = sphi 0, %s138
      %s162 = sphi 0, %s164
      %s165 = sphi 0, %s162
      %s166 = sphi 0, %s165
      %s182 = sphi 0, %s166
    $region4: #{tpu_custom_call.1} parent=1 // loop_header_branch
      %21 = sbr.rel (%p19) target = $region8
    $region5: #{tpu_custom_call.1} parent=1 // loop_body
      %s23 = ssub.s32 %s18, 1
      %s24 = ssub.s32 %s18, 2
      %s31 = sadd.s32 1, %s26
      %p32 = scmp.ge.s32.totalorder %s31, 1
      %s33 = scalar_select %p32, 0, %s31
      %s34 = sadd.s32 1, %s25
      %s35 = scalar_select %p32, %s34, %s25
      %p36 = scmp.ge.s32.totalorder %s35, 2
      %s37 = scalar_select %p36, 0, %s35
      %s38 = ssub.s32 %s25, %s37
      %p39 = scmp.eq.s32.totalorder %s38, 0
      %s41 = sadd.s32 %s40, 1
      %s42 = scalar_select %p39, %s40, %s41
      %p45 = pneg %p39
      %p46 = scmp.eq.s32.totalorder %s18, 1
      %p47 = por %p45, %p46
      %p48 = scmp.ne.s32.totalorder %s40, %s43
      %p49 = scmp.eq.s32.totalorder %s18, 0
      %p50 = por %p48, %p49
      %p51 = scmp.ne.s32.totalorder %s40, %s43
      %p52 = scmp.eq.s32.totalorder %s23, 1
      %p53 = por %p51, %p52
      %p54 = scmp.ne.s32.totalorder %s43, %s44
      %p55 = scmp.eq.s32.totalorder %s23, 0
      %p56 = por %p54, %p55
      %p57 = scmp.ne.s32.totalorder %s43, %s44
      %p58 = scmp.eq.s32.totalorder %s24, 1
      %p59 = por %p57, %p58
      %p61 = scmp.ne.s32.totalorder %s44, %s60
      %p62 = scmp.eq.s32.totalorder %s24, 0
      %p63 = por %p61, %p62
      %s65 = sadd.s32 %s64, 1
      %p68 = scmp.eq.s32.totalorder %s18, 1
      %p69 = scmp.ne.s32.totalorder %s64, %s66
      %p70 = scmp.eq.s32.totalorder %s18, 0
      %p71 = por %p69, %p70
      %p72 = scmp.ne.s32.totalorder %s64, %s66
      %p73 = scmp.eq.s32.totalorder %s23, 1
      %p74 = por %p72, %p73
      %p75 = scmp.ne.s32.totalorder %s66, %s67
      %p76 = scmp.eq.s32.totalorder %s23, 0
      %p77 = por %p75, %p76
      %p78 = scmp.ne.s32.totalorder %s66, %s67
      %p79 = scmp.eq.s32.totalorder %s24, 1
      %p80 = por %p78, %p79
      %p82 = scmp.ne.s32.totalorder %s67, %s81
      %p83 = scmp.eq.s32.totalorder %s24, 0
      %p84 = por %p82, %p83
      %s86 = sadd.s32 %s85, 1
      %p89 = scmp.eq.s32.totalorder %s18, 1
      %p90 = scmp.ne.s32.totalorder %s85, %s87
      %p91 = scmp.eq.s32.totalorder %s18, 0
      %p92 = por %p90, %p91
      %p93 = scmp.ne.s32.totalorder %s85, %s87
      %p94 = scmp.eq.s32.totalorder %s23, 1
      %p95 = por %p93, %p94
      %p96 = scmp.ne.s32.totalorder %s87, %s88
      %p97 = scmp.eq.s32.totalorder %s23, 0
      %p98 = por %p96, %p97
      %p99 = scmp.ne.s32.totalorder %s87, %s88
      %p100 = scmp.eq.s32.totalorder %s24, 1
      %p101 = por %p99, %p100
      %p103 = scmp.ne.s32.totalorder %s88, %s102
      %p104 = scmp.eq.s32.totalorder %s24, 0
      %p105 = por %p103, %p104
      %s106 = ssub.s32 %s26, %s33
      %p107 = scmp.eq.s32.totalorder %s106, 0
      %s109 = sadd.s32 %s108, 1
      %s110 = scalar_select %p107, %s108, %s109
      %p113 = pneg %p107
      %p114 = scmp.eq.s32.totalorder %s18, 1
      %p115 = por %p113, %p114
      %p116 = scmp.ne.s32.totalorder %s108, %s111
      %p117 = scmp.eq.s32.totalorder %s18, 0
      %p118 = por %p116, %p117
      %p119 = scmp.ne.s32.totalorder %s108, %s111
      %p120 = scmp.eq.s32.totalorder %s23, 1
      %p121 = por %p119, %p120
      %p122 = scmp.ne.s32.totalorder %s111, %s112
      %p123 = scmp.eq.s32.totalorder %s23, 0
      %p124 = por %p122, %p123
      %p125 = scmp.ne.s32.totalorder %s111, %s112
      %p126 = scmp.eq.s32.totalorder %s24, 1
      %p127 = por %p125, %p126
      %p129 = scmp.ne.s32.totalorder %s112, %s128
      %p130 = scmp.eq.s32.totalorder %s24, 0
      %p131 = por %p129, %p130
      %s132 = ssub.s32 %s26, %s33
      %p133 = scmp.eq.s32.totalorder %s132, 0
      %s135 = sadd.s32 %s134, 1
      %s136 = scalar_select %p133, %s134, %s135
      %p139 = pneg %p133
      %p140 = scmp.eq.s32.totalorder %s18, 1
      %p141 = por %p139, %p140
      %p142 = scmp.ne.s32.totalorder %s134, %s137
      %p143 = scmp.eq.s32.totalorder %s18, 0
      %p144 = por %p142, %p143
      %p145 = scmp.ne.s32.totalorder %s134, %s137
      %p146 = scmp.eq.s32.totalorder %s23, 1
      %p147 = por %p145, %p146
      %p148 = scmp.ne.s32.totalorder %s137, %s138
      %p149 = scmp.eq.s32.totalorder %s23, 0
      %p150 = por %p148, %p149
      %p151 = scmp.ne.s32.totalorder %s137, %s138
      %p152 = scmp.eq.s32.totalorder %s24, 1
      %p153 = por %p151, %p152
      %p155 = scmp.ne.s32.totalorder %s138, %s154
      %p156 = scmp.eq.s32.totalorder %s24, 0
      %p157 = por %p155, %p156
      %s158 = ssub.s32 %s25, %s37
      %s159 = ssub.s32 %s26, %s33
      %s160 = sor.u32 %s158, %s159
      %p161 = scmp.eq.s32.totalorder %s160, 0
      %s163 = sadd.s32 %s162, 1
      %s164 = scalar_select %p161, %s162, %s163
      %p167 = pneg %p161
      %p168 = scmp.eq.s32.totalorder %s18, 1
      %p169 = por %p167, %p168
      %p170 = scmp.ne.s32.totalorder %s162, %s165
      %p171 = scmp.eq.s32.totalorder %s18, 0
      %p172 = por %p170, %p171
      %p173 = scmp.ne.s32.totalorder %s162, %s165
      %p174 = scmp.eq.s32.totalorder %s23, 1
      %p175 = por %p173, %p174
      %p176 = scmp.ne.s32.totalorder %s165, %s166
      %p177 = scmp.eq.s32.totalorder %s23, 0
      %p178 = por %p176, %p177
      %p179 = scmp.ne.s32.totalorder %s165, %s166
      %p180 = scmp.eq.s32.totalorder %s24, 1
      %p181 = por %p179, %p180
      %p183 = scmp.ne.s32.totalorder %s166, %s182
      %p184 = scmp.eq.s32.totalorder %s24, 0
      %p185 = por %p183, %p184
      %p186 = scmp.le.s32.totalorder 1, %s18
      %p187 = scmp.lt.s32.totalorder %s18, 3
      %p188 = pnand %p186, %p187
      %p189 = pneg %p188
      // Predicated region
      $region9: #{tpu_custom_call.1} parent=5 // pred_check
        _
      $region10: #{tpu_custom_call.1} parent=5 // pred_check_branch
        %191 = sbr.rel (%p188) target = $region12
      $region11: #{tpu_custom_call.1} parent=5 // pred_region
        %s192 = ssub.s32 %s18, 1
        // Predicated region
        $region13: #{tpu_custom_call.1} parent=11 // pred_check
          %p193 = pneg %p77
        $region14: #{tpu_custom_call.1} parent=11 // pred_check_branch
          %195 = sbr.rel (%p193) target = $region16
        $region15: #{tpu_custom_call.1} parent=11 // pred_region
          _
        $region16: #{tpu_custom_call.1} parent=11 // pred_fallthru
          _
        // Predicated region
        $region17: #{tpu_custom_call.1} parent=11 // pred_check
          %p196 = pneg %p98
        $region18: #{tpu_custom_call.1} parent=11 // pred_check_branch
          %198 = sbr.rel (%p196) target = $region20
        $region19: #{tpu_custom_call.1} parent=11 // pred_region
          _
        $region20: #{tpu_custom_call.1} parent=11 // pred_fallthru
          _
        // Predicated region
        $region21: #{tpu_custom_call.1} parent=11 // pred_check
          %p199 = pneg %p124
        $region22: #{tpu_custom_call.1} parent=11 // pred_check_branch
          %201 = sbr.rel (%p199) target = $region24
        $region23: #{tpu_custom_call.1} parent=11 // pred_region
          %s203 = ssub.s32 1024, 1024
          %204 = vsyncadd [#allocation7], %s203
          %s205 = smul.addr %s28, 64
          %s206 = scalar_lea.hbm %s3, %s205
          %s207 = sshll.u32 [#allocation6], 4
          %s208 = int_to_ptr.vmem [resolvable:$true] %s207
          %213 = dma.hbm_to_vmem [thread:$0]  %s206, 1024, %s208, [#allocation7], 64, 64, 4
        $region24: #{tpu_custom_call.1} parent=11 // pred_fallthru
          _
        // Predicated region
        $region25: #{tpu_custom_call.1} parent=11 // pred_check
          %p214 = pneg %p150
        $region26: #{tpu_custom_call.1} parent=11 // pred_check_branch
          %216 = sbr.rel (%p214) target = $region28
        $region27: #{tpu_custom_call.1} parent=11 // pred_region
          %p217 = scmp.lt.s32.totalorder %s28, 0
          %s218 = scalar_select %p217, %s28, 0
          %s219 = scalar_lea.vmem %s4, %s218
        $region28: #{tpu_custom_call.1} parent=11 // pred_fallthru
          _
      $region12: #{tpu_custom_call.1} parent=5 // pred_fallthru
        _
      %p220 = scmp.lt.s32.totalorder %s18, 2
      // Predicated region
      $region29: #{tpu_custom_call.1} parent=5 // pred_check
        %p221 = pneg %p220
      $region30: #{tpu_custom_call.1} parent=5 // pred_check_branch
        %223 = sbr.rel (%p221) target = $region32
      $region31: #{tpu_custom_call.1} parent=5 // pred_region
        // Predicated region
        $region33: #{tpu_custom_call.1} parent=31 // pred_check
          %p224 = pneg %p50
        $region34: #{tpu_custom_call.1} parent=31 // pred_check_branch
          %226 = sbr.rel (%p224) target = $region36
        $region35: #{tpu_custom_call.1} parent=31 // pred_region
          %s227 = sand.u32 %s40, 1
          %s228 = scalar_lea.sflag [#allocation4], %s227
          %s229 = sand.u32 %s40, 1
          %s230 = smul.addr %s229, 8
          %s231 = scalar_lea.vmem [#allocation3], %s230
          %s233 = ssub.s32 128, 128
          %234 = vsyncadd %s228, %s233
          %s235 = smul.addr %s25, 128
          %s236 = scalar_lea.hbm %s0, %s235
          %s238 = sshll.u32 %s231, 4
          %s239 = int_to_ptr.vmem [resolvable:$true] %s238
          %241 = dma.hbm_to_vmem [thread:$0]  %s236, 128, %s239, %s228
        $region36: #{tpu_custom_call.1} parent=31 // pred_fallthru
          _
      $region32: #{tpu_custom_call.1} parent=5 // pred_fallthru
        _
      %p242 = scmp.le.s32.totalorder 1, %s18
      %p243 = scmp.lt.s32.totalorder %s18, 3
      %p244 = pnand %p242, %p243
      %p245 = pneg %p244
      // Predicated region
      $region37: #{tpu_custom_call.1} parent=5 // pred_check
        _
      $region38: #{tpu_custom_call.1} parent=5 // pred_check_branch
        %247 = sbr.rel (%p244) target = $region40
      $region39: #{tpu_custom_call.1} parent=5 // pred_region
        %s248 = ssub.s32 %s18, 1
        %s249 = sand.u32 %s43, 1
        %s250 = scalar_lea.sflag [#allocation4], %s249
        %s251 = sand.u32 %s43, 1
        %s252 = smul.addr %s251, 8
        %s253 = scalar_lea.vmem [#allocation3], %s252
        // Predicated region
        $region41: #{tpu_custom_call.1} parent=39 // pred_check
          %p254 = pneg %p56
        $region42: #{tpu_custom_call.1} parent=39 // pred_check_branch
          %256 = sbr.rel (%p254) target = $region44
        $region43: #{tpu_custom_call.1} parent=39 // pred_region
          %257 = dma.done %s250, 128
        $region44: #{tpu_custom_call.1} parent=39 // pred_fallthru
          _
        // Predicated region
        $region45: #{tpu_custom_call.1} parent=39 // pred_check
          %p258 = pneg %p124
        $region46: #{tpu_custom_call.1} parent=39 // pred_check_branch
          %260 = sbr.rel (%p258) target = $region48
        $region47: #{tpu_custom_call.1} parent=39 // pred_region
          %261 = dma.done [#allocation7], 1024
        $region48: #{tpu_custom_call.1} parent=39 // pred_fallthru
          _
        %s262 = sand.u32 %s43, 1
        %s263 = scalar_lea.sflag [#allocation4], %s262
        %s264 = sand.u32 %s43, 1
        %s265 = smul.addr %s264, 8
        %s266 = scalar_lea.vmem [#allocation3], %s265
        %p267 = pneg %p56
        %p268 = pneg %p53
        %p269 = pneg %p77
        %p270 = pneg %p74
        %p271 = pneg %p98
        %p272 = pneg %p95
        %p273 = pneg %p124
        %p274 = pneg %p121
        %p275 = scmp.lt.s32.totalorder %s28, 0
        %s276 = scalar_select %p275, %s28, 0
        %s277 = scalar_lea.vmem %s4, %s276
        %p278 = pneg %p150
        %p279 = pneg %p147
        %p280 = pneg %p178
        %p281 = pneg %p175
        %s282 = sand.u32 %s165, 1
        %s283 = scalar_lea.sflag [#allocation5], %s282
        %s284 = sand.u32 %s165, 1
        %s285 = smul.addr %s284, 8
        %s286 = scalar_lea.vmem [#allocation8], %s285
        %p287 = scmp.lt.s32.totalorder %s28, 0
        %s288 = scalar_select %p287, %s28, 0
        %s289 = scalar_lea.vmem %s4, %s288
        %p291 = scmp.eq.s32.totalorder %s28, 0
        // Predicated region
        $region49: #{tpu_custom_call.1} parent=39 // pred_check
          %p292 = pneg %p291
        $region50: #{tpu_custom_call.1} parent=39 // pred_check_branch
          %294 = sbr.rel (%p292) target = $region52
        $region51: #{tpu_custom_call.1} parent=39 // pred_region
          %v295 = vld [vmem:[%s253] sm:$0xff]
          %296 = vadd.xlane.f32.xlu0 %v295
          %v297 = vpop.xlane.xlu0 %296
          %v298 = vrcp.pop 128.0
          %v299 = vmul.f32 %v297, %v298
          %v300 = vsub.f32 %v295, %v299
          %v301 = vmul.f32 %v300, %v300
          %302 = vadd.xlane.f32.xlu0 %v301
          %v303 = vpop.xlane.xlu0 %302
          %v304 = vmul.f32 %v303, %v298
          %v305 = vadd.f32 %v304, 1e-05
          %v306 = vrsqrt.pop %v305
          %v307 = vmul.f32 %v300, %v306
          %v308 = vld [vmem:[%s1] sm:$0x1]
          %v310 = vlaneseq
          %v311 = vshrl.u32 %v310, 7
          %v312 = vsub.s32 0, %v311
          %v313 = vrot.slane %v308, %v312
          %v315 = vmul.f32 %v307, %v313
          %v316 = vld [vmem:[%s2] sm:$0x1]
          %v318 = vlaneseq
          %v319 = vshrl.u32 %v318, 7
          %v320 = vsub.s32 0, %v319
          %v321 = vrot.slane %v316, %v320
          %v323 = vadd.f32 %v315, %v321
          %v324 = vpack.c.bf16 %v323, %v323
          %325 = vst [vmem:[#allocation2] sm:$0xf] %v324
        $region52: #{tpu_custom_call.1} parent=39 // pred_fallthru
          _
        %v326 = vld [vmem:[#allocation2] sm:$0xf]
        %v327 = vld [vmem:[#allocation6] sm:$0xf]
        %v328 = vld [vmem:[#allocation6 + $0x4] sm:$0xf]
        %v329 = vld [vmem:[#allocation6 + $0x8] sm:$0xf]
        %v330 = vld [vmem:[#allocation6 + $0xc] sm:$0xf]
        %v331 = vld [vmem:[#allocation6 + $0x10] sm:$0xf]
        %v332 = vld [vmem:[#allocation6 + $0x14] sm:$0xf]
        %v333 = vld [vmem:[#allocation6 + $0x18] sm:$0xf]
        %v334 = vld [vmem:[#allocation6 + $0x1c] sm:$0xf]
        %v335 = vld [vmem:[#allocation6 + $0x20] sm:$0xf]
        %v336 = vld [vmem:[#allocation6 + $0x24] sm:$0xf]
        %v337 = vld [vmem:[#allocation6 + $0x28] sm:$0xf]
        %v338 = vld [vmem:[#allocation6 + $0x2c] sm:$0xf]
        %v339 = vld [vmem:[#allocation6 + $0x30] sm:$0xf]
        %v340 = vld [vmem:[#allocation6 + $0x34] sm:$0xf]
        %v341 = vld [vmem:[#allocation6 + $0x38] sm:$0xf]
        %v342 = vld [vmem:[#allocation6 + $0x3c] sm:$0xf]
        %v343 = vld [vmem:[%s289] sm:$0x1]
        %v345 = vlaneseq
        %v346 = vshrl.u32 %v345, 7
        %v347 = vsub.s32 0, %v346
        %v348 = vrot.slane %v343, %v347
        %v366 = vunpack.c.l.b16 %v327
        %v367 = vunpack.c.l.b16 %v328
        %v368 = vunpack.c.l.b16 %v329
        %v369 = vunpack.c.l.b16 %v330
        %v370 = vunpack.c.l.b16 %v331
        %v371 = vunpack.c.l.b16 %v332
        %v372 = vunpack.c.l.b16 %v333
        %v373 = vunpack.c.l.b16 %v334
        %v374 = vunpack.c.l.b16 %v335
        %v375 = vunpack.c.l.b16 %v336
        %v376 = vunpack.c.l.b16 %v337
        %v377 = vunpack.c.l.b16 %v338
        %v378 = vunpack.c.l.b16 %v339
        %v379 = vunpack.c.l.b16 %v340
        %v380 = vunpack.c.l.b16 %v341
        %v381 = vunpack.c.l.b16 %v342
        %v382 = vpack.c.b16 %v367, %v366
        %v383 = vpack.c.b16 %v369, %v368
        %v384 = vpack.c.b16 %v371, %v370
        %v385 = vpack.c.b16 %v373, %v372
        %v386 = vpack.c.b16 %v375, %v374
        %v387 = vpack.c.b16 %v377, %v376
        %v388 = vpack.c.b16 %v379, %v378
        %v389 = vpack.c.b16 %v381, %v380
        %398 = vmatprep.subr.bf16.mxu0 0
        %399 = vmatpush1.bf16.msra.mxu0 %v389
        %400 = vmatprep.subr.bf16.mxu0 0
        %401 = vmatpush1.bf16.msra.mxu0 %v388
        %402 = vmatprep.subr.bf16.mxu0 0
        %403 = vmatpush1.bf16.msra.mxu0 %v387
        %404 = vmatprep.subr.bf16.mxu0 0
        %405 = vmatpush1.bf16.msra.mxu0 %v386
        %406 = vmatprep.subr.bf16.mxu0 0
        %407 = vmatpush1.bf16.msra.mxu0 %v385
        %408 = vmatprep.subr.bf16.mxu0 0
        %409 = vmatpush1.bf16.msra.mxu0 %v384
        %410 = vmatprep.subr.bf16.mxu0 0
        %411 = vmatpush1.bf16.msra.mxu0 %v383
        %412 = vmatprep.subr.bf16.mxu0 0
        %413 = vmatpush1.bf16.msra.mxu0 %v382
        %414 = vmatprep.subr.bf16.mxu0 0
        %415 = vmatpush2.bf16.msra.mxu0 0
        %416 = vmatprep.subr.bf16.mxu0 0
        %417 = vmatpush2.bf16.msra.mxu0 0
        %418 = vmatprep.subr.bf16.mxu0 0
        %419 = vmatpush2.bf16.msra.mxu0 0
        %420 = vmatprep.subr.bf16.mxu0 0
        %421 = vmatpush2.bf16.msra.mxu0 0
        %422 = vmatprep.subr.bf16.mxu0 0
        %423 = vmatpush2.bf16.msra.mxu0 0
        %424 = vmatprep.subr.bf16.mxu0 0
        %425 = vmatpush2.bf16.msra.mxu0 0
        %426 = vmatprep.subr.bf16.mxu0 0
        %427 = vmatpush2.bf16.msra.mxu0 0
        %428 = vmatprep.subr.bf16.mxu0 0
        %429 = vmatpush2.bf16.msra.mxu0 0
        %430 = vmatprep.mubr.bf16.mxu0 0
        %431 = vmatmul.mubr.bf16.gmra.mxu0 %v326
        %v432 = vpop.f32.mrf.mxu0
        %v433 = vadd.f32 %v348, %v432
        %v434 = vpop.f32.mrf.mxu0
        %v435 = vpop.f32.mrf.mxu0
        %v436 = vpop.f32.mrf.mxu0
        %437 = vdwg.mxu0
        %438 = vst [vmem:[%s286] sm:$0xff] %v433
        %s439 = sand.u32 %s165, 1
        %s440 = scalar_lea.sflag [#allocation5], %s439
        %s441 = sand.u32 %s165, 1
        %s442 = smul.addr %s441, 8
        %s443 = scalar_lea.vmem [#allocation8], %s442
        // Predicated region
        $region53: #{tpu_custom_call.1} parent=39 // pred_check
          %p444 = pneg %p175
        $region54: #{tpu_custom_call.1} parent=39 // pred_check_branch
          %446 = sbr.rel (%p444) target = $region56
        $region55: #{tpu_custom_call.1} parent=39 // pred_region
          %s448 = ssub.s32 128, 128
          %449 = vsyncadd %s440, %s448
          %s450 = sadd.s32 %s28, %s27
          %s451 = smul.addr %s450, 128
          %s452 = scalar_lea.hbm %s5, %s451
          %s454 = sshll.u32 %s443, 4
          %s455 = int_to_ptr.vmem [resolvable:$true] %s454
          %457 = dma.vmem_to_hbm [thread:$0]  %s455, 128, %s452, %s440
        $region56: #{tpu_custom_call.1} parent=39 // pred_fallthru
          _
      $region40: #{tpu_custom_call.1} parent=5 // pred_fallthru
        _
      %p458 = scmp.le.s32.totalorder 2, %s18
      // Predicated region
      $region57: #{tpu_custom_call.1} parent=5 // pred_check
        %p459 = pneg %p458
      $region58: #{tpu_custom_call.1} parent=5 // pred_check_branch
        %461 = sbr.rel (%p459) target = $region60
      $region59: #{tpu_custom_call.1} parent=5 // pred_region
        %s462 = ssub.s32 %s18, 2
        // Predicated region
        $region61: #{tpu_custom_call.1} parent=59 // pred_check
          %p463 = pneg %p181
        $region62: #{tpu_custom_call.1} parent=59 // pred_check_branch
          %465 = sbr.rel (%p463) target = $region64
        $region63: #{tpu_custom_call.1} parent=59 // pred_region
          %s466 = sand.u32 %s166, 1
          %s467 = scalar_lea.sflag [#allocation5], %s466
          %s468 = sand.u32 %s166, 1
          %s469 = smul.addr %s468, 8
          %s470 = scalar_lea.vmem [#allocation8], %s469
          %471 = dma.done %s467, 128
        $region64: #{tpu_custom_call.1} parent=59 // pred_fallthru
          _
      $region60: #{tpu_custom_call.1} parent=5 // pred_fallthru
        _
    $region6: #{tpu_custom_call.1} parent=1 // loop_footer
      %s22 = sadd.s32 1, %s18
    $region7: #{tpu_custom_call.1} parent=1 // loop_footer_branch
      %17 = sbr.rel target = $region3
    $region8: #{tpu_custom_call.1} parent=1 // loop_exit
      _
    %472 = vsyncpa [#allocation4], 1
    %s473 = scalar_lea.sflag [#allocation4], 1
    %474 = vsyncpa %s473, 1
    %475 = vsyncpa [#allocation7], 1
    %476 = vsyncpa [#allocation5], 1
    %s477 = scalar_lea.sflag [#allocation5], 1
    %478 = vsyncpa %s477, 1

</llo_original>
